<compile_context>
chip_gen: v7x
topology: tpu7x:2x2x1
jax: 0.10.0
libtpu: 0.0.40
codegen_flags: <defaults>
</compile_context>

<pallas_src>
import functools

import jax
import jax.numpy as jnp
from jax.experimental import pallas as pl
from jax.experimental.pallas import tpu as pltpu


# ----------------------------- helpers --------------------------------------

def _round_up(x, m):
    return ((x + m - 1) // m) * m


def _vmem_capacity_bytes():
    try:
        info = pltpu.get_tpu_info()
        cap = int(getattr(info, "vmem_capacity_bytes", 0) or 0)
        if cap > 0:
            return cap
    except Exception:
        pass
    return 64 * 1024 * 1024  # conservative fallback (v7x per-TC VMEM)


_VMEM_CAP = _vmem_capacity_bytes()
_VMEM_BUDGET = max(24 * 1024 * 1024, int(0.60 * _VMEM_CAP))      # tile selection budget
_VMEM_LIMIT_CAP = max(32 * 1024 * 1024, int(0.75 * _VMEM_CAP))   # compiler vmem_limit cap


def _working_set_bytes(tm, tn, tk, in_bytes, multi_k):
    # double-buffered x tile, weight tile, output tile, bias tile (+ f32 acc)
    ws = 2 * (tm * tk * in_bytes + tk * tn * in_bytes + tm * tn * 4 + tn * 4)
    if multi_k:
        ws += tm * tn * 4
    return ws


# ----------------------------- Pallas kernels -------------------------------

def _linear_kernel_single_k(x_ref, w_ref, b_ref, o_ref):
    # x_ref: (tm, Kp)  activations (f32 or bf16)
    # w_ref: (Kp, tn)  pre-transposed weight (MXU-native layout)
    # b_ref: (1,  tn)  f32 bias
    # o_ref: (tm, tn)  f32 output
    acc = jnp.dot(x_ref[...], w_ref[...], preferred_element_type=jnp.float32)
    o_ref[...] = acc + b_ref[...]


def _linear_kernel_multi_k(x_ref, w_ref, b_ref, o_ref, acc_ref):
    # Same as above but with a K grid axis and a persistent f32 accumulator.
    k = pl.program_id(2)

    @pl.when(k == 0)
    def _():
        acc_ref[...] = jnp.zeros_like(acc_ref)

    acc_ref[...] += jnp.dot(x_ref[...], w_ref[...],
                            preferred_element_type=jnp.float32)

    @pl.when(k == pl.num_programs(2) - 1)
    def _():
        o_ref[...] = acc_ref[...] + b_ref[...]


# ----------------------- one-time parameter preparation ----------------------

def prepare_linear_params(weight, bias, *, tn=1024, tk=2048, tm_hint=256,
                          use_bf16=False, collapse_k=True):
    """Transpose weight to (K, N), pad to tile multiples, optionally cast to
    bf16 -- done ONCE per layer so no weight copy happens per forward call."""
    N, K = weight.shape
    in_bytes = 2 if use_bf16 else 4
    Ka = _round_up(K, 128)
    Na = _round_up(N, 128)
    tn_eff = min(_round_up(tn, 128), Na)
    tk_eff = min(_round_up(tk, 128), Ka)
    tm_hint = max(8, _round_up(tm_hint, 8))

    # Collapse the K grid when the full K strip fits the VMEM budget:
    # removes the accumulator RMW and the init/finalize branches.
    if collapse_k and _working_set_bytes(tm_hint, tn_eff, Ka, in_bytes,
                                         False) <= _VMEM_BUDGET:
        tk_eff = Ka
    else:
        while (tk_eff > 128 and
               _working_set_bytes(tm_hint, tn_eff, tk_eff, in_bytes,
                                  True) > _VMEM_BUDGET):
            tk_eff = max(128, _round_up(tk_eff // 2, 128))
        while (tn_eff > 128 and
               _working_set_bytes(tm_hint, tn_eff, tk_eff, in_bytes,
                                  True) > _VMEM_BUDGET):
            tn_eff = max(128, _round_up(tn_eff // 2, 128))

    # v7x megacore: if N is a single block and halving tn costs no extra
    # padding, halve it so both TensorCores get work even at tiny batch.
    if (_round_up(N, tn_eff) // tn_eff < 2 and tn_eff >= 256
            and (tn_eff // 2) % 128 == 0
            and _round_up(N, tn_eff // 2) == _round_up(N, tn_eff)):
        tn_eff //= 2

    Np = _round_up(N, tn_eff)
    Kp = _round_up(K, tk_eff)

    compute_dtype = jnp.bfloat16 if use_bf16 else jnp.float32
    # Pre-transposed (K, N) weight: rhs feeds the MXU directly, no XLU xpose.
    wt = jnp.zeros((Kp, Np), compute_dtype).at[:K, :N].set(
        weight.T.astype(compute_dtype))
    b = jnp.zeros((1, Np), jnp.float32).at[0, :N].set(bias.astype(jnp.float32))

    return dict(wt=wt, b=b, n_out=N, tn=tn_eff, tk=tk_eff, use_bf16=use_bf16)


# ------------------------------- forward pass --------------------------------

@functools.partial(jax.jit,
                   static_argnames=("tm", "tn", "tk", "n_out", "use_bf16"))
def _linear_forward_impl(x, wt, b, *, tm, tn, tk, n_out, use_bf16):
    B, K = x.shape
    Kp, Np = wt.shape

    compute_dtype = jnp.bfloat16 if use_bf16 else jnp.float32
    in_bytes = 2 if use_bf16 else 4

    tm_eff = min(max(8, _round_up(tm, 8)), _round_up(B, 8))
    grid_k = Kp // tk
    # Shrink tm if a caller-supplied tm would blow the VMEM budget.
    while (tm_eff > 8 and
           _working_set_bytes(tm_eff, tn, tk, in_bytes,
                              grid_k > 1) > _VMEM_BUDGET):
        tm_eff = max(8, _round_up(tm_eff // 2, 8))

    Mp = _round_up(B, tm_eff)

    # Only the activations are cast/padded per call (zero padding along K is
    # exact; padded rows are sliced off below).
    xp = x.astype(compute_dtype)
    if Mp != B or Kp != K:
        xp = jnp.pad(xp, ((0, Mp - B), (0, Kp - K)))

    grid_m = Mp // tm_eff
    grid_n = Np // tn

    ws = _working_set_bytes(tm_eff, tn, tk, in_bytes, grid_k > 1)
    vmem_limit = min(max(int(1.25 * ws) + (2 << 20), 32 << 20), _VMEM_LIMIT_CAP)

    flops = 2 * Mp * Np * Kp
    bytes_accessed = (in_bytes * Mp * Kp * grid_n      # x re-streamed per N block
                      + in_bytes * Kp * Np * grid_m    # weight re-streamed per M block
                      + 4 * Mp * Np                    # output
                      + 4 * Np * grid_m)               # bias
    cost = pl.CostEstimate(flops=flops, transcendentals=0,
                           bytes_accessed=bytes_accessed)

    out_shape = jax.ShapeDtypeStruct((Mp, Np), jnp.float32)

    if grid_k == 1:
        out_p = pl.pallas_call(
            _linear_kernel_single_k,
            out_shape=out_shape,
            grid_spec=pltpu.PrefetchScalarGridSpec(
                num_scalar_prefetch=0,
                grid=(grid_m, grid_n),
                in_specs=[
                    pl.BlockSpec((tm_eff, Kp), lambda i, j: (i, 0)),  # x
                    pl.BlockSpec((Kp, tn), lambda i, j: (0, j)),      # weight (K, N)
                    pl.BlockSpec((1, tn), lambda i, j: (0, j)),       # bias
                ],
                out_specs=pl.BlockSpec((tm_eff, tn), lambda i, j: (i, j)),
            ),
            compiler_params=pltpu.CompilerParams(
                dimension_semantics=("parallel", "parallel"),
                vmem_limit_bytes=vmem_limit,
            ),
            cost_estimate=cost,
        )(xp, wt, b)
    else:
        out_p = pl.pallas_call(
            _linear_kernel_multi_k,
            out_shape=out_shape,
            grid_spec=pltpu.PrefetchScalarGridSpec(
                num_scalar_prefetch=0,
                grid=(grid_m, grid_n, grid_k),
                in_specs=[
                    pl.BlockSpec((tm_eff, tk), lambda i, j, k: (i, k)),  # x
                    pl.BlockSpec((tk, tn), lambda i, j, k: (k, j)),      # weight (K, N)
                    pl.BlockSpec((1, tn), lambda i, j, k: (0, j)),       # bias
                ],
                out_specs=pl.BlockSpec((tm_eff, tn), lambda i, j, k: (i, j)),
                scratch_shapes=[pltpu.VMEM((tm_eff, tn), jnp.float32)],
            ),
            compiler_params=pltpu.CompilerParams(
                dimension_semantics=("parallel", "parallel", "arbitrary"),
                vmem_limit_bytes=vmem_limit,
            ),
            cost_estimate=cost,
        )(xp, wt, b)

    return out_p[:B, :n_out]


def linear_forward(x, params, *, tm=256):
    """x: (B, input_dim); params from prepare_linear_params."""
    return _linear_forward_impl(
        x, params["wt"], params["b"],
        tm=tm, tn=params["tn"], tk=params["tk"],
        n_out=params["n_out"], use_bf16=params["use_bf16"])


# ------------------------ Parameter init (plain JAX) -------------------------

def make_linear_layer_params(key, input_dim, output_dim, dist="uniform",
                             use_bias=True, mask=None,
                             positivity_constraints=False,
                             sparsity_constraints=False):
    """Deterministic re-implementation of LinearLayer.__init__ parameter setup."""
    kw, = jax.random.split(key, 1)

    # _generate_weight
    if dist == "uniform":
        sqrt_k = jnp.sqrt(jnp.asarray(1.0 / input_dim, jnp.float32))
        w = jax.random.uniform(kw, (output_dim, input_dim), jnp.float32) * sqrt_k
        w = w * 2.0 - sqrt_k
    elif dist == "normal":
        w = (jax.random.normal(kw, (output_dim, input_dim), jnp.float32)
             / jnp.sqrt(jnp.asarray(input_dim, jnp.float32)))
    elif dist == "zero":
        w = jnp.zeros((output_dim, input_dim), jnp.float32)
    else:
        raise NotImplementedError(dist)

    # _generate_bias (zeros regardless; use_bias only toggles requires_grad)
    b = jnp.zeros((output_dim,), jnp.float32)

    # _init_constraints
    positivity_mask = None
    sparsity_mask = None
    if mask is not None:
        mask = jnp.asarray(mask)
        if positivity_constraints:
            pm = jnp.ones(mask.shape, jnp.int32)
            pm = jnp.where(mask < 0, -1, pm)
            pm = jnp.where(mask > 0, 1, pm)
            positivity_mask = pm
        if sparsity_constraints:
            sparsity_mask = (mask != 0).astype(jnp.float32)
    if positivity_constraints and positivity_mask is not None:
        w = w * positivity_mask.astype(jnp.float32)
    if sparsity_constraints and sparsity_mask is not None:
        w = w * sparsity_mask
        # _rescale_weight_bias
        scale = sparsity_mask.sum(axis=1).max() / input_dim
        w = w / scale

    return w, b


# --------------------------------- Demo --------------------------------------

if __name__ == "__main__":
    key = jax.random.PRNGKey(0)
    k_x, k_w, k_m, k_x2, k_w2 = jax.random.split(key, 5)

    # --- Test 1: module-sized small shapes, sparse weight (K-collapsed path) ---
    batch, input_dim, output_dim = 8, 32, 64
    mask = (jax.random.uniform(k_m, (output_dim, input_dim)) > 0.5).astype(jnp.int32)
    weight, bias = make_linear_layer_params(
        k_w, input_dim, output_dim, dist="uniform", use_bias=True,
        mask=mask, positivity_constraints=False, sparsity_constraints=True)
    x = jax.random.normal(k_x, (batch, input_dim), jnp.float32)

    params = prepare_linear_params(weight, bias)
    out = jax.block_until_ready(linear_forward(x, params))
    ref = x.astype(jnp.float32) @ weight.T + bias
    assert out.shape == (batch, output_dim)
    assert jnp.allclose(out, ref, atol=1e-5, rtol=1e-5), "mismatch (test 1)"

    # --- Test 2: forced multi-tile (M, N, K) accumulation path, unaligned dims ---
    b2, in2, out2 = 16, 384, 640
    w2, bias2 = make_linear_layer_params(k_w2, in2, out2, dist="normal", use_bias=True)
    x2 = jax.random.normal(k_x2, (b2, in2), jnp.float32)

    params2 = prepare_linear_params(w2, bias2, tn=256, tk=128, collapse_k=False)
    out2_val = jax.block_until_ready(linear_forward(x2, params2, tm=128))
    ref2 = x2.astype(jnp.float32) @ w2.T + bias2
    assert out2_val.shape == (b2, out2)
    assert jnp.allclose(out2_val, ref2, atol=1e-4, rtol=1e-4), "mismatch (test 2)"

    # --- Test 3: bf16 fast path (bf16 weights in HBM, f32 accumulate) ---
    params3 = prepare_linear_params(w2, bias2, use_bf16=True)
    out3 = jax.block_until_ready(linear_forward(x2, params3))
    assert out3.shape == (b2, out2)
    assert jnp.allclose(out3, ref2, atol=1e-1, rtol=5e-2), "mismatch (test 3, bf16)"

    # TODO(synk): enforce_constraints / _balance_excitatory_inhibitory are
    # training-time parameter mutations, not part of forward(); omitted here.
    print("KERNEL_OK")
</pallas_src>

<mosaic_0001>
module attributes {stable_mosaic.version = 11 : i64} {
  func.func @_linear_kernel_single_k(%arg0: i32, %arg1: i32, %arg2: memref<8x128xf32, #tpu.memory_space<vmem>>, %arg3: memref<128x128xf32, #tpu.memory_space<vmem>>, %arg4: memref<1x128xf32, #tpu.memory_space<vmem>>, %arg5: memref<8x128xf32, #tpu.memory_space<vmem>>) attributes {dimension_semantics = [#tpu.dimension_semantics<parallel>, #tpu.dimension_semantics<parallel>], iteration_bounds = array<i64: 1, 1>, scalar_prefetch = 0 : i64, scratch_operands = 0 : i64, tpu.core_type = #tpu.core_type<tc>, window_params = [{transform_indices = @transform_0, window_bounds = array<i64: 8, 128>}, {transform_indices = @transform_1, window_bounds = array<i64: 128, 128>}, {transform_indices = @transform_2, window_bounds = array<i64: 1, 128>}, {transform_indices = @transform_3, window_bounds = array<i64: 8, 128>}]} {
    %c0 = arith.constant 0 : index
    %c0_0 = arith.constant 0 : index
    %0 = vector.load %arg2[%c0, %c0_0] : memref<8x128xf32, #tpu.memory_space<vmem>>, vector<8x128xf32>
    %c0_1 = arith.constant 0 : index
    %c0_2 = arith.constant 0 : index
    %1 = vector.load %arg3[%c0_1, %c0_2] : memref<128x128xf32, #tpu.memory_space<vmem>>, vector<128x128xf32>
    %cst = arith.constant dense<0.000000e+00> : vector<8x128xf32>
    %2 = tpu.matmul %0, %1, %cst {dimension_numbers = #tpu.dot_dimension_numbers<[1], [0], [0], [1], [0, 0, 1, 1], [], []>} : vector<8x128xf32>, vector<128x128xf32>, vector<8x128xf32> -> vector<8x128xf32>
    %c0_3 = arith.constant 0 : index
    %c0_4 = arith.constant 0 : index
    %3 = vector.load %arg4[%c0_3, %c0_4] : memref<1x128xf32, #tpu.memory_space<vmem>>, vector<1x128xf32>
    %4 = vector.broadcast %3 : vector<1x128xf32> to vector<8x128xf32>
    %5 = arith.addf %2, %4 : vector<8x128xf32>
    %c0_5 = arith.constant 0 : index
    %c0_6 = arith.constant 0 : index
    %6 = vector.load %arg5[%c0_5, %c0_6] : memref<8x128xf32, #tpu.memory_space<vmem>>, vector<8x128xf32>
    tpu.vector_store %arg5[%c0_5, %c0_6], %5 {strides = array<i32>} : memref<8x128xf32, #tpu.memory_space<vmem>>, vector<8x128xf32>,
    return
  }
  func.func @transform_0(%arg0: i32, %arg1: i32) -> (i32, i32) {
    %c0_i32 = arith.constant 0 : i32
    %c0_i32_0 = arith.constant 0 : i32
    return %arg0, %c0_i32 : i32, i32
  }
  func.func @transform_1(%arg0: i32, %arg1: i32) -> (i32, i32) {
    %c0_i32 = arith.constant 0 : i32
    %c0_i32_0 = arith.constant 0 : i32
    return %c0_i32, %arg1 : i32, i32
  }
  func.func @transform_2(%arg0: i32, %arg1: i32) -> (i32, i32) {
    %c0_i32 = arith.constant 0 : i32
    %c0_i32_0 = arith.constant 0 : i32
    return %c0_i32, %arg1 : i32, i32
  }
  func.func @transform_3(%arg0: i32, %arg1: i32) -> (i32, i32) {
    %c0_i32 = arith.constant 0 : i32
    return %arg0, %arg1 : i32, i32
  }
}

</mosaic_0001>

<llo_original>
// kernel: _linear_forward_impl.1
$region0: #{_linear_forward_impl.1}
  #allocation0 [shape = 'u32[]', space=smem, size = 0x4, offset = 0x4, fixed_abs, tag = 'smem constant byte address 0x4 - core index']
  #allocation1 [shape = 'u32[144,128]{1,0:T(1,128)}', space=vmem, size = 0x12000, scoped, tag = 'internal scratch']
  %s0 = inlined_call_operand.vmem [shape: f32[8,128], index: 0, kind: input, shape index: {}]
  %s1 = inlined_call_operand.hbm [shape: f32[128,128], index: 1, kind: input, shape index: {}]
  %s2 = inlined_call_operand.vmem [shape: f32[1,128], index: 2, kind: input, shape index: {}]
  %s3 = inlined_call_operand.hbm [shape: f32[8,128], index: 3, kind: output, shape index: {}]
  %s4 = sld [smem:[#allocation0]]
  $region26: #{_linear_forward_impl.1} parent=0
    _
  %s6 = ssub.s32 1, %s4
  %s7 = scalar_select 0, %s6, %s4
  $region1: #{_linear_forward_impl.1} parent=0
    #allocation2 [shape = 'u8[65536]{0}', space=vmem, size = 0x10000, scoped, tag = 'input window, operand 1, single buffered']
    #allocation3 [shape = 's32[1]{0}', space=sflag, size = 0x4, scoped, tag = 'scoped memory for _linear_forward_impl.1']
    #allocation4 [shape = 's32[1]{0}', space=sflag, size = 0x4, scoped, tag = 'scoped memory for _linear_forward_impl.1']
    #allocation5 [shape = 'u8[4096]{0}', space=vmem, size = 0x1000, scoped, tag = 'output window, operand 0, single buffered']
    %8 = vsyncpa [#allocation3], 0
    %9 = vsyncpa [#allocation4], 0
    // Predicated region
    $region2: #{_linear_forward_impl.1} parent=1 // pred_check
      _
    $region3: #{_linear_forward_impl.1} parent=1 // pred_check_branch
      %11 = sbr.rel (0) target = $region5
    $region4: #{_linear_forward_impl.1} parent=1 // pred_region
      _
    $region5: #{_linear_forward_impl.1} parent=1 // pred_fallthru
      _
    // Predicated region
    $region6: #{_linear_forward_impl.1} parent=1 // pred_check
      _
    $region7: #{_linear_forward_impl.1} parent=1 // pred_check_branch
      %13 = sbr.rel (0) target = $region9
    $region8: #{_linear_forward_impl.1} parent=1 // pred_region
      %s15 = ssub.s32 2048, 2048
      %16 = vsyncadd [#allocation3], %s15
      %s17 = sshll.u32 [#allocation2], 4
      %s18 = int_to_ptr.vmem [resolvable:$true] %s17
      %23 = dma.hbm_to_vmem [thread:$0]  %s1, 2048, %s18, [#allocation3], 128, 128, 8
    $region9: #{_linear_forward_impl.1} parent=1 // pred_fallthru
      _
    // Predicated region
    $region10: #{_linear_forward_impl.1} parent=1 // pred_check
      _
    $region11: #{_linear_forward_impl.1} parent=1 // pred_check_branch
      %25 = sbr.rel (0) target = $region13
    $region12: #{_linear_forward_impl.1} parent=1 // pred_region
      _
    $region13: #{_linear_forward_impl.1} parent=1 // pred_fallthru
      _
    // Predicated region
    $region14: #{_linear_forward_impl.1} parent=1 // pred_check
      _
    $region15: #{_linear_forward_impl.1} parent=1 // pred_check_branch
      %27 = sbr.rel (0) target = $region17
    $region16: #{_linear_forward_impl.1} parent=1 // pred_region
      %28 = dma.done [#allocation3], 2048
    $region17: #{_linear_forward_impl.1} parent=1 // pred_fallthru
      _
    %v29 = vld [vmem:[%s0] sm:$0xff]
    %v30 = vld [vmem:[#allocation2] sm:$0xff]
    %v31 = vld [vmem:[#allocation2 + $0x8] sm:$0xff]
    %v32 = vld [vmem:[#allocation2 + $0x10] sm:$0xff]
    %v33 = vld [vmem:[#allocation2 + $0x18] sm:$0xff]
    %v34 = vld [vmem:[#allocation2 + $0x20] sm:$0xff]
    %v35 = vld [vmem:[#allocation2 + $0x28] sm:$0xff]
    %v36 = vld [vmem:[#allocation2 + $0x30] sm:$0xff]
    %v37 = vld [vmem:[#allocation2 + $0x38] sm:$0xff]
    %v38 = vld [vmem:[#allocation2 + $0x40] sm:$0xff]
    %v39 = vld [vmem:[#allocation2 + $0x48] sm:$0xff]
    %v40 = vld [vmem:[#allocation2 + $0x50] sm:$0xff]
    %v41 = vld [vmem:[#allocation2 + $0x58] sm:$0xff]
    %v42 = vld [vmem:[#allocation2 + $0x60] sm:$0xff]
    %v43 = vld [vmem:[#allocation2 + $0x68] sm:$0xff]
    %v44 = vld [vmem:[#allocation2 + $0x70] sm:$0xff]
    %v45 = vld [vmem:[#allocation2 + $0x78] sm:$0xff]
    %v46 = vld [vmem:[%s2] sm:$0x1]
    %v48 = vlaneseq
    %v49 = vshrl.u32 %v48, 7
    %v50 = vsub.s32 0, %v49
    %v51 = vrot.slane %v46, %v50
    %53 = vmatprep.subr.mxu0 0.0
    %54 = vmatpush1.msra.mxu0 %v30
    %55 = vmatprep.subr.mxu0 0.0
    %56 = vmatpush1.msra.mxu0 %v31
    %57 = vmatprep.subr.mxu0 0.0
    %58 = vmatpush1.msra.mxu0 %v32
    %59 = vmatprep.subr.mxu0 0.0
    %60 = vmatpush1.msra.mxu0 %v33
    %61 = vmatprep.subr.mxu0 0.0
    %62 = vmatpush1.msra.mxu0 %v34
    %63 = vmatprep.subr.mxu0 0.0
    %64 = vmatpush1.msra.mxu0 %v35
    %65 = vmatprep.subr.mxu0 0.0
    %66 = vmatpush1.msra.mxu0 %v36
    %67 = vmatprep.subr.mxu0 0.0
    %68 = vmatpush1.msra.mxu0 %v37
    %69 = vmatprep.subr.mxu0 0.0
    %70 = vmatpush1.msra.mxu0 %v38
    %71 = vmatprep.subr.mxu0 0.0
    %72 = vmatpush1.msra.mxu0 %v39
    %73 = vmatprep.subr.mxu0 0.0
    %74 = vmatpush1.msra.mxu0 %v40
    %75 = vmatprep.subr.mxu0 0.0
    %76 = vmatpush1.msra.mxu0 %v41
    %77 = vmatprep.subr.mxu0 0.0
    %78 = vmatpush1.msra.mxu0 %v42
    %79 = vmatprep.subr.mxu0 0.0
    %80 = vmatpush1.msra.mxu0 %v43
    %81 = vmatprep.subr.mxu0 0.0
    %82 = vmatpush1.msra.mxu0 %v44
    %83 = vmatprep.subr.mxu0 0.0
    %84 = vmatpush1.msra.mxu0 %v45
    %85 = vmatprep.subr.mxu0 0.0
    %86 = vmatpush1.msra.mxu0 0.0
    %87 = vmatprep.subr.mxu0 0.0
    %88 = vmatpush1.msra.mxu0 0.0
    %89 = vmatprep.subr.mxu0 0.0
    %90 = vmatpush1.msra.mxu0 0.0
    %91 = vmatprep.subr.mxu0 0.0
    %92 = vmatpush1.msra.mxu0 0.0
    %93 = vmatprep.subr.mxu0 0.0
    %94 = vmatpush1.msra.mxu0 0.0
    %95 = vmatprep.subr.mxu0 0.0
    %96 = vmatpush1.msra.mxu0 0.0
    %97 = vmatprep.subr.mxu0 0.0
    %98 = vmatpush1.msra.mxu0 0.0
    %99 = vmatprep.subr.mxu0 0.0
    %100 = vmatpush1.msra.mxu0 0.0
    %101 = vmatprep.subr.mxu0 0.0
    %102 = vmatpush1.msra.mxu0 0.0
    %103 = vmatprep.subr.mxu0 0.0
    %104 = vmatpush1.msra.mxu0 0.0
    %105 = vmatprep.subr.mxu0 0.0
    %106 = vmatpush1.msra.mxu0 0.0
    %107 = vmatprep.subr.mxu0 0.0
    %108 = vmatpush1.msra.mxu0 0.0
    %109 = vmatprep.subr.mxu0 0.0
    %110 = vmatpush1.msra.mxu0 0.0
    %111 = vmatprep.subr.mxu0 0.0
    %112 = vmatpush1.msra.mxu0 0.0
    %113 = vmatprep.subr.mxu0 0.0
    %114 = vmatpush1.msra.mxu0 0.0
    %115 = vmatprep.subr.mxu0 0.0
    %116 = vmatpush1.msra.mxu0 0.0
    %117 = vmatprep.mubr.f32.mxu0 0.0
    %118 = vmatmul.mubr.f32.gmra.mrb[0].mxu0 %v29
    %v119 = vpop.f32.mrb[0].mxu0
    %v120 = vadd.f32 %v51, %v119
    %v121 = vpop.f32.mrb[0].mxu0
    %122 = vdwg.mxu0
    %123 = vst [vmem:[#allocation5] sm:$0xff] %v120
    // Predicated region
    $region18: #{_linear_forward_impl.1} parent=1 // pred_check
      _
    $region19: #{_linear_forward_impl.1} parent=1 // pred_check_branch
      %125 = sbr.rel (0) target = $region21
    $region20: #{_linear_forward_impl.1} parent=1 // pred_region
      %s127 = ssub.s32 128, 128
      %128 = vsyncadd [#allocation4], %s127
      %s130 = sshll.u32 [#allocation5], 4
      %s131 = int_to_ptr.vmem [resolvable:$true] %s130
      %133 = dma.vmem_to_hbm [thread:$0]  %s131, 128, %s3, [#allocation4]
    $region21: #{_linear_forward_impl.1} parent=1 // pred_fallthru
      _
    // Predicated region
    $region22: #{_linear_forward_impl.1} parent=1 // pred_check
      _
    $region23: #{_linear_forward_impl.1} parent=1 // pred_check_branch
      %135 = sbr.rel (0) target = $region25
    $region24: #{_linear_forward_impl.1} parent=1 // pred_region
      %136 = dma.done [#allocation4], 128
    $region25: #{_linear_forward_impl.1} parent=1 // pred_fallthru
      _
    %137 = vsyncpa [#allocation3], 1
    %138 = vsyncpa [#allocation4], 1

</llo_original>
